<compile_context>
chip_gen: v6e
topology: v6e:2x2x1
jax: 0.10.0
libtpu: 0.0.40
codegen_flags: <defaults>
</compile_context>

<pallas_src>
import functools

import jax
import jax.numpy as jnp
from jax import lax
from jax.experimental import pallas as pl
from jax.experimental.pallas import tpu as pltpu


# EUP reciprocal in the attention finalize (~1e-3 relative deviation in the
# softmax normalization vs. an exact divide). Set False for exact parity.
_APPROX_RECIP = True

# Explicit scoped-VMEM budget: above v5e's 16 MiB default, below v7x's 64 MiB
# physical per-core VMEM, with headroom for double buffering (kernels below
# use <= ~20 MiB at the largest tiles).
_VMEM_LIMIT_BYTES = 48 * 1024 * 1024

_MM_M_TILES = (1024, 512, 256, 128, 64, 32, 16, 8)    # GEMM token axis
_MM_N_TILES = (512, 256, 128)                          # GEMM lane axis
_MM_K_TILES = (512, 256, 128)                          # GEMM reduction axis
_ATTN_TILES = (512, 256, 128, 64, 32, 16, 8)           # attention q / kv tiles
_NORM_M_TILES = (256, 128, 64, 32, 16, 8)              # norm token tiles
_MM_SEM = ("parallel", "parallel", "arbitrary")


def _pick_tile(dim, candidates, align):
    """Largest candidate dividing `dim`; otherwise the largest divisor of `dim`
    that is `align`-aligned (or the full dim) and no bigger than the largest
    candidate — so odd shapes never silently fall back to a huge VMEM block."""
    for c in candidates:
        if dim >= c and dim % c == 0:
            return c
    for c in range(min(max(candidates), dim), 0, -1):
        if dim % c == 0 and (c % align == 0 or c == dim):
            return c
    return dim


def _mm_params():
    return pltpu.CompilerParams(dimension_semantics=_MM_SEM,
                                vmem_limit_bytes=_VMEM_LIMIT_BYTES)


def _row_params():
    return pltpu.CompilerParams(dimension_semantics=("parallel",),
                                vmem_limit_bytes=_VMEM_LIMIT_BYTES)


# ---------------------------------------------------------------------------
# RMSNorm statistics kernels (the normalized tensor itself is never written;
# consumers fold `x * inv_rms * ln_w` into their matmul prologue).
# ---------------------------------------------------------------------------
def _rms_stats_kernel(x_ref, inv_ref, *, eps):
    x = x_ref[...].astype(jnp.float32)
    var = jnp.mean(x * x, axis=-1, keepdims=True)
    inv_ref[...] = lax.rsqrt(var + eps)


def rms_stats(x, eps):
    T, H = x.shape
    tm = _pick_tile(T, _NORM_M_TILES, 8)
    return pl.pallas_call(
        functools.partial(_rms_stats_kernel, eps=eps),
        out_shape=jax.ShapeDtypeStruct((T, 1), jnp.float32),
        grid=(T // tm,),
        in_specs=[pl.BlockSpec((tm, H), lambda i: (i, 0))],
        out_specs=pl.BlockSpec((tm, 1), lambda i: (i, 0)),
        compiler_params=_row_params(),
    )(x)


def _add_rms_stats_kernel(x_ref, r_ref, s_ref, inv_ref, *, eps):
    s = x_ref[...].astype(jnp.float32) + r_ref[...].astype(jnp.float32)
    s_ref[...] = s.astype(s_ref.dtype)            # new residual
    var = jnp.mean(s * s, axis=-1, keepdims=True)
    inv_ref[...] = lax.rsqrt(var + eps)


def add_rms_stats(x, residual, eps):
    """Fused residual-add + RMSNorm statistics.  Returns (x+residual, inv_rms)."""
    T, H = x.shape
    tm = _pick_tile(T, _NORM_M_TILES, 8)
    spec = pl.BlockSpec((tm, H), lambda i: (i, 0))
    return pl.pallas_call(
        functools.partial(_add_rms_stats_kernel, eps=eps),
        out_shape=(jax.ShapeDtypeStruct((T, H), x.dtype),
                   jax.ShapeDtypeStruct((T, 1), jnp.float32)),
        grid=(T // tm,),
        in_specs=[spec, spec],
        out_specs=(spec, pl.BlockSpec((tm, 1), lambda i: (i, 0))),
        compiler_params=_row_params(),
    )(x, residual)


def _add_rmsnorm_kernel(x_ref, r_ref, w_ref, o_ref, *, eps):
    s = x_ref[...].astype(jnp.float32) + r_ref[...].astype(jnp.float32)
    var = jnp.mean(s * s, axis=-1, keepdims=True)
    o_ref[...] = (s * lax.rsqrt(var + eps) * w_ref[...]).astype(o_ref.dtype)


def add_rmsnorm(x, residual, w, eps):
    """Final ln_f: fused add + full RMSNorm (normalized output materialized)."""
    T, H = x.shape
    tm = _pick_tile(T, _NORM_M_TILES, 8)
    spec = pl.BlockSpec((tm, H), lambda i: (i, 0))
    return pl.pallas_call(
        functools.partial(_add_rmsnorm_kernel, eps=eps),
        out_shape=jax.ShapeDtypeStruct((T, H), x.dtype),
        grid=(T // tm,),
        in_specs=[spec, spec, pl.BlockSpec((1, H), lambda i: (0, 0))],
        out_specs=spec,
        compiler_params=_row_params(),
    )(x, residual, w.reshape(1, -1))


# ---------------------------------------------------------------------------
# plain tiled matmul (no bias): attention c_proj / MLP down proj
# ---------------------------------------------------------------------------
def _matmul_kernel(x_ref, w_ref, o_ref, acc_ref):
    @pl.when(pl.program_id(2) == 0)
    def _():
        acc_ref[...] = jnp.zeros_like(acc_ref)

    acc_ref[...] += jnp.dot(x_ref[...], w_ref[...],
                            preferred_element_type=jnp.float32)

    @pl.when(pl.program_id(2) == pl.num_programs(2) - 1)
    def _():
        o_ref[...] = acc_ref[...].astype(o_ref.dtype)


def linear(x, w):
    T, K = x.shape
    _, N = w.shape
    tm = _pick_tile(T, _MM_M_TILES, 8)
    tn = _pick_tile(N, _MM_N_TILES, 128)
    tk = _pick_tile(K, _MM_K_TILES, 128)
    return pl.pallas_call(
        _matmul_kernel,
        out_shape=jax.ShapeDtypeStruct((T, N), x.dtype),
        grid=(T // tm, N // tn, K // tk),
        in_specs=[pl.BlockSpec((tm, tk), lambda i, j, k: (i, k)),
                  pl.BlockSpec((tk, tn), lambda i, j, k: (k, j))],
        out_specs=pl.BlockSpec((tm, tn), lambda i, j, k: (i, j)),
        scratch_shapes=[pltpu.VMEM((tm, tn), jnp.float32)],
        compiler_params=_mm_params(),
    )(x, w)


# ---------------------------------------------------------------------------
# Fused RMSNorm-scale + QKV projection (+bias) + NeoX RoPE + attention scale.
# Emits q/k/v directly in [nh, T, hd] layout (BlockSpec does the head split,
# the epilogue only lane-slices whole heads out of the f32 accumulators).
# ---------------------------------------------------------------------------
def _qkv_rope_kernel(x_ref, inv_ref, wln_ref, wq_ref, wk_ref, wv_ref,
                     bq_ref, bk_ref, bv_ref, cos_ref, sin_ref,
                     q_ref, k_ref, v_ref, aq_ref, ak_ref, av_ref,
                     *, hd, heads_per_tile, scale, use_roll):
    kk = pl.program_id(2)

    @pl.when(kk == 0)
    def _():
        aq_ref[...] = jnp.zeros_like(aq_ref)
        ak_ref[...] = jnp.zeros_like(ak_ref)
        av_ref[...] = jnp.zeros_like(av_ref)

    # RMSNorm folded into the matmul prologue: x_norm = x * inv_rms * ln_w.
    xn = (x_ref[...].astype(jnp.float32) * inv_ref[...] * wln_ref[...]
          ).astype(x_ref.dtype)                       # bf16 MXU operand
    aq_ref[...] += jnp.dot(xn, wq_ref[...], preferred_element_type=jnp.float32)
    ak_ref[...] += jnp.dot(xn, wk_ref[...], preferred_element_type=jnp.float32)
    av_ref[...] += jnp.dot(xn, wv_ref[...], preferred_element_type=jnp.float32)

    @pl.when(kk == pl.num_programs(2) - 1)
    def _():
        cos = cos_ref[...]                            # [tm, hd] f32
        sin = sin_ref[...]                            # [tm, hd] f32 (signed)
        half = hd // 2

        def rotate(t):
            if use_roll:                              # lane-aligned head_dim
                return pltpu.roll(t, shift=half, axis=1)
            return jnp.concatenate([t[:, half:], t[:, :half]], axis=-1)

        for h in range(heads_per_tile):
            lo, hi = h * hd, (h + 1) * hd
            q = aq_ref[:, lo:hi] + bq_ref[:, lo:hi]   # f32 [tm, hd]
            k = ak_ref[:, lo:hi] + bk_ref[:, lo:hi]
            v = av_ref[:, lo:hi] + bv_ref[:, lo:hi]
            q = (q * cos + rotate(q) * sin) * scale   # RoPE + attn scale on q
            k = k * cos + rotate(k) * sin
            q_ref[h] = q.astype(q_ref.dtype)
            k_ref[h] = k.astype(k_ref.dtype)
            v_ref[h] = v.astype(v_ref.dtype)


def qkv_rope_proj(x, inv_rms, w_ln, wq, wk, wv, bq, bk, bv, cos, sin,
                  nh, hd, scale):
    T, H = x.shape
    tm = _pick_tile(T, _MM_M_TILES, 8)
    tk = _pick_tile(H, _MM_K_TILES, 128)
    # N tile must cover whole heads so the epilogue can rotate per head.
    n_cands = tuple(c for c in _MM_N_TILES if c % hd == 0) or (H,)
    tn = _pick_tile(H, n_cands, 128)
    if tn % hd != 0:
        tn = H
    g = tn // hd
    use_roll = (hd % 128 == 0)

    x_spec = pl.BlockSpec((tm, tk), lambda i, j, k: (i, k))
    inv_spec = pl.BlockSpec((tm, 1), lambda i, j, k: (i, 0))
    wln_spec = pl.BlockSpec((1, tk), lambda i, j, k: (0, k))
    w_spec = pl.BlockSpec((tk, tn), lambda i, j, k: (k, j))
    b_spec = pl.BlockSpec((1, tn), lambda i, j, k: (0, j))
    cs_spec = pl.BlockSpec((tm, hd), lambda i, j, k: (i, 0))
    o_spec = pl.BlockSpec((g, tm, hd), lambda i, j, k: (j, i, 0))
    out = jax.ShapeDtypeStruct((nh, T, hd), x.dtype)

    return pl.pallas_call(
        functools.partial(_qkv_rope_kernel, hd=hd, heads_per_tile=g,
                          scale=scale, use_roll=use_roll),
        out_shape=(out, out, out),
        grid=(T // tm, H // tn, H // tk),
        in_specs=[x_spec, inv_spec, wln_spec, w_spec, w_spec, w_spec,
                  b_spec, b_spec, b_spec, cs_spec, cs_spec],
        out_specs=(o_spec, o_spec, o_spec),
        scratch_shapes=[pltpu.VMEM((tm, tn), jnp.float32),
                        pltpu.VMEM((tm, tn), jnp.float32),
                        pltpu.VMEM((tm, tn), jnp.float32)],
        compiler_params=_mm_params(),
    )(x, inv_rms, w_ln.reshape(1, -1), wq, wk, wv,
      bq.reshape(1, -1), bk.reshape(1, -1), bv.reshape(1, -1), cos, sin)


# ---------------------------------------------------------------------------
# Fused RMSNorm-scale + MergedColumnParallelLinear(gate|up) + SiLU*mul.
# ---------------------------------------------------------------------------
def _gate_up_silu_kernel(x_ref, inv_ref, wln_ref, wg_ref, wu_ref, o_ref,
                         ag_ref, au_ref):
    kk = pl.program_id(2)

    @pl.when(kk == 0)
    def _():
        ag_ref[...] = jnp.zeros_like(ag_ref)
        au_ref[...] = jnp.zeros_like(au_ref)

    xn = (x_ref[...].astype(jnp.float32) * inv_ref[...] * wln_ref[...]
          ).astype(x_ref.dtype)
    ag_ref[...] += jnp.dot(xn, wg_ref[...], preferred_element_type=jnp.float32)
    au_ref[...] += jnp.dot(xn, wu_ref[...], preferred_element_type=jnp.float32)

    @pl.when(kk == pl.num_programs(2) - 1)
    def _():
        g = ag_ref[...]
        o_ref[...] = (g * lax.logistic(g) * au_ref[...]).astype(o_ref.dtype)


def gate_up_silu(x, inv_rms, w_ln, wg, wu):
    T, K = x.shape
    N = wg.shape[1]
    tm = _pick_tile(T, _MM_M_TILES, 8)
    tn = _pick_tile(N, _MM_N_TILES, 128)
    tk = _pick_tile(K, _MM_K_TILES, 128)
    x_spec = pl.BlockSpec((tm, tk), lambda i, j, k: (i, k))
    inv_spec = pl.BlockSpec((tm, 1), lambda i, j, k: (i, 0))
    wln_spec = pl.BlockSpec((1, tk), lambda i, j, k: (0, k))
    w_spec = pl.BlockSpec((tk, tn), lambda i, j, k: (k, j))
    o_spec = pl.BlockSpec((tm, tn), lambda i, j, k: (i, j))
    return pl.pallas_call(
        _gate_up_silu_kernel,
        out_shape=jax.ShapeDtypeStruct((T, N), x.dtype),
        grid=(T // tm, N // tn, K // tk),
        in_specs=[x_spec, inv_spec, wln_spec, w_spec, w_spec],
        out_specs=o_spec,
        scratch_shapes=[pltpu.VMEM((tm, tn), jnp.float32),
                        pltpu.VMEM((tm, tn), jnp.float32)],
        compiler_params=_mm_params(),
    )(x, inv_rms, w_ln.reshape(1, -1), wg, wu)


# ---------------------------------------------------------------------------
# Causal flash attention: head-batched grid (nh//HB, T//tq, T//tkv), bf16 MXU
# operands with f32 accumulation, online softmax in VMEM scratch, K/V DMA for
# fully-masked blocks skipped by clamping the index_map onto the diagonal,
# mask applied only on diagonal blocks, lane-dense [T, H] output.
# ---------------------------------------------------------------------------
def _flash_attn_kernel(q_ref, k_ref, v_ref, o_ref, m_ref, l_ref, acc_ref,
                       *, tq, tkv, hb):
    qi = pl.program_id(1)
    ki = pl.program_id(2)

    @pl.when(ki == 0)
    def _():
        m_ref[...] = jnp.full_like(m_ref, -jnp.inf)
        l_ref[...] = jnp.zeros_like(l_ref)
        acc_ref[...] = jnp.zeros_like(acc_ref)

    q_lo = qi * tq
    q_hi = q_lo + tq - 1
    k_lo = ki * tkv
    k_hi = k_lo + tkv - 1
    needs_any = k_lo <= q_hi          # block intersects the visible region
    fully_visible = k_hi <= q_lo      # strictly below the diagonal: no mask

    def online_step(apply_mask):
        # q is pre-scaled in the QKV epilogue; keep bf16 operands for the MXU.
        s = jnp.einsum("hqd,hkd->hqk", q_ref[...], k_ref[...],
                       preferred_element_type=jnp.float32)
        if apply_mask:
            row = q_lo + lax.broadcasted_iota(jnp.int32, (tq, tkv), 0)
            col = k_lo + lax.broadcasted_iota(jnp.int32, (tq, tkv), 1)
            s = jnp.where((col <= row)[None, :, :], s, -1e30)
        m_prev = m_ref[...]
        m_new = jnp.maximum(m_prev, jnp.max(s, axis=-1, keepdims=True))
        alpha = jnp.exp(m_prev - m_new)
        p = jnp.exp(s - m_new)
        l_ref[...] = alpha * l_ref[...] + jnp.sum(p, axis=-1, keepdims=True)
        acc_ref[...] = alpha * acc_ref[...] + jnp.einsum(
            "hqk,hkd->hqd", p.astype(v_ref.dtype), v_ref[...],
            preferred_element_type=jnp.float32)
        m_ref[...] = m_new

    @pl.when(fully_visible)
    def _():
        online_step(apply_mask=False)

    @pl.when(jnp.logical_and(needs_any, jnp.logical_not(fully_visible)))
    def _():
        online_step(apply_mask=True)

    @pl.when(ki == pl.num_programs(2) - 1)
    def _():
        inv_l = pl.reciprocal(l_ref[...], approx=_APPROX_RECIP)   # EUP
        out = jnp.concatenate([acc_ref[h] * inv_l[h] for h in range(hb)],
                              axis=-1)                            # [tq, hb*hd]
        o_ref[...] = out.astype(o_ref.dtype)


def _pick_head_block(nh, hd):
    for hb in (16, 8, 4, 2, 1):
        if nh % hb == 0 and (hb * hd) % 128 == 0:
            return hb
    return nh                      # hb*hd == H -> full-lane output block


def flash_attention(q, k, v):
    nh, T, hd = q.shape
    hb = _pick_head_block(nh, hd)
    tq = _pick_tile(T, _ATTN_TILES, 8)
    tkv = _pick_tile(T, _ATTN_TILES, 8)

    def kv_block(h, i, j):
        # Clamp fully-masked kv blocks onto the causal diagonal block: Pallas
        # skips the DMA when the block index repeats, so K/V strictly above
        # the diagonal are never fetched.
        jmax = (i * tq + tq - 1) // tkv
        return (h, jnp.minimum(j, jmax), 0)

    q_spec = pl.BlockSpec((hb, tq, hd), lambda h, i, j: (h, i, 0))
    kv_spec = pl.BlockSpec((hb, tkv, hd), kv_block)
    o_spec = pl.BlockSpec((tq, hb * hd), lambda h, i, j: (i, h))
    return pl.pallas_call(
        functools.partial(_flash_attn_kernel, tq=tq, tkv=tkv, hb=hb),
        out_shape=jax.ShapeDtypeStruct((T, nh * hd), q.dtype),
        grid=(nh // hb, T // tq, T // tkv),
        in_specs=[q_spec, kv_spec, kv_spec],
        out_specs=o_spec,
        scratch_shapes=[pltpu.VMEM((hb, tq, 1), jnp.float32),
                        pltpu.VMEM((hb, tq, 1), jnp.float32),
                        pltpu.VMEM((hb, tq, hd), jnp.float32)],
        compiler_params=pltpu.CompilerParams(
            dimension_semantics=("parallel", "parallel", "arbitrary"),
            vmem_limit_bytes=_VMEM_LIMIT_BYTES),
    )(q, k, v)


# ---------------------------------------------------------------------------
# model glue
# ---------------------------------------------------------------------------
def make_rope_tables(positions, head_dim, base):
    inv_freq = 1.0 / (base ** (jnp.arange(0, head_dim, 2, dtype=jnp.float32)
                               / head_dim))
    freqs = positions.astype(jnp.float32)[:, None] * inv_freq[None, :]
    cos = jnp.cos(freqs)
    sin = jnp.sin(freqs)
    cos_full = jnp.concatenate([cos, cos], axis=-1)        # [T, hd]
    sin_signed = jnp.concatenate([-sin, sin], axis=-1)     # [T, hd]
    return cos_full, sin_signed


def init_params(key, cfg):
    H = cfg["hidden_size"]
    I = cfg["intermediate_size"] // 2      # QWenMLP uses intermediate_size // 2
    V = cfg["vocab_size"]
    std = 0.02

    def nrm(k, shape):
        return (std * jax.random.normal(k, shape, dtype=jnp.float32)
                ).astype(jnp.bfloat16)

    keys = jax.random.split(key, 1 + cfg["num_hidden_layers"])
    params = {"wte": nrm(keys[0], (V, H)),
              "ln_f": jnp.ones((H,), jnp.float32),
              "layers": []}
    for li in range(cfg["num_hidden_layers"]):
        ks = jax.random.split(keys[1 + li], 9)
        params["layers"].append({
            "ln_1": jnp.ones((H,), jnp.float32),
            "wq": nrm(ks[0], (H, H)),
            "wk": nrm(ks[1], (H, H)),
            "wv": nrm(ks[2], (H, H)),
            "bq": std * jax.random.normal(ks[3], (H,), dtype=jnp.float32),
            "bk": std * jax.random.normal(ks[4], (H,), dtype=jnp.float32),
            "bv": std * jax.random.normal(ks[5], (H,), dtype=jnp.float32),
            "attn_proj_w": nrm(ks[6], (H, H)),
            "ln_2": jnp.ones((H,), jnp.float32),
            "wg": nrm(ks[7], (H, I)),
            "wu": nrm(ks[8], (H, I)),
            "down_w": nrm(jax.random.fold_in(ks[8], 1), (I, H)),
        })
    return params


def qwen_forward(params, input_ids, positions, cfg):
    H = cfg["hidden_size"]
    nh = cfg["num_attention_heads"]
    hd = H // nh
    eps = cfg["layer_norm_epsilon"]
    scaling = hd ** -0.5

    cos_full, sin_signed = make_rope_tables(positions, hd, cfg["rope_theta"])

    # TODO(synk): embedding gather + vLLM paged KV-cache / attn_metadata plumbing
    # have no clean single-kernel Pallas form; gather is plain JAX, attention is
    # full causal prefill over the provided tokens.
    hidden = jnp.take(params["wte"], input_ids, axis=0)

    residual = None
    for layer in params["layers"]:
        if residual is None:
            residual = hidden
            x_src = hidden
            inv = rms_stats(hidden, eps)                     # ln_1 stats only
        else:
            x_src, inv = add_rms_stats(hidden, residual, eps)
            residual = x_src

        # QKV + bias + RoPE + attn scale, normalized input folded in.
        q, k, v = qkv_rope_proj(x_src, inv, layer["ln_1"],
                                layer["wq"], layer["wk"], layer["wv"],
                                layer["bq"], layer["bk"], layer["bv"],
                                cos_full, sin_signed, nh, hd, scaling)
        attn = flash_attention(q, k, v)                      # [T, H]
        hidden = linear(attn, layer["attn_proj_w"])          # c_proj (no bias)

        x2, inv2 = add_rms_stats(hidden, residual, eps)      # ln_2
        residual = x2
        act = gate_up_silu(x2, inv2, layer["ln_2"], layer["wg"], layer["wu"])
        hidden = linear(act, layer["down_w"])                # mlp c_proj

    out = add_rmsnorm(hidden, residual, params["ln_f"], eps)
    return out


# ---------------------------------------------------------------------------
if __name__ == "__main__":
    cfg = dict(
        vocab_size=128,
        hidden_size=32,
        num_attention_heads=4,
        num_hidden_layers=2,
        intermediate_size=128,          # MLP uses intermediate_size // 2 = 64
        max_position_embeddings=64,
        layer_norm_epsilon=1e-6,
        rope_theta=10000.0,
    )
    T = 8

    key = jax.random.PRNGKey(0)
    k_param, k_ids = jax.random.split(key)
    params = init_params(k_param, cfg)
    input_ids = jax.random.randint(k_ids, (T,), 0, cfg["vocab_size"], dtype=jnp.int32)
    positions = jnp.arange(T, dtype=jnp.int32)

    hidden_states = qwen_forward(params, input_ids, positions, cfg)
    hidden_states = jax.block_until_ready(hidden_states)
    assert hidden_states.shape == (T, cfg["hidden_size"])
    assert bool(jnp.all(jnp.isfinite(hidden_states.astype(jnp.float32))))
    print("KERNEL_OK")
</pallas_src>

<mosaic_0001>
module attributes {stable_mosaic.version = 11 : i64} {
  func.func @_rms_stats_kernel(%arg0: i32, %arg1: memref<8x32xbf16, #tpu.memory_space<vmem>>, %arg2: memref<8x1xf32, #tpu.memory_space<vmem>>) attributes {dimension_semantics = [#tpu.dimension_semantics<parallel>], iteration_bounds = array<i64: 1>, scalar_prefetch = 0 : i64, scratch_operands = 0 : i64, tpu.core_type = #tpu.core_type<tc>, window_params = [{transform_indices = @transform_0, window_bounds = array<i64: 8, 32>}, {transform_indices = @transform_1, window_bounds = array<i64: 8, 1>}]} {
    %c0 = arith.constant 0 : index
    %c0_0 = arith.constant 0 : index
    %0 = vector.load %arg1[%c0, %c0_0] : memref<8x32xbf16, #tpu.memory_space<vmem>>, vector<8x32xbf16>
    %1 = arith.extf %0 : vector<8x32xbf16> to vector<8x32xf32>
    %2 = arith.mulf %1, %1 : vector<8x32xf32>
    %cst = arith.constant dense<0.000000e+00> : vector<8xf32>
    %3 = vector.multi_reduction <add>, %2, %cst [1] : vector<8x32xf32> to vector<8xf32>
    %4 = vector.shape_cast %3 : vector<8xf32> to vector<8x1xf32>
    %cst_1 = arith.constant 3.200000e+01 : f32
    %5 = vector.broadcast %cst_1 : f32 to vector<8x1xf32>
    %6 = arith.divf %4, %5 : vector<8x1xf32>
    %cst_2 = arith.constant 9.99999997E-7 : f32
    %7 = vector.broadcast %cst_2 : f32 to vector<8x1xf32>
    %8 = arith.addf %6, %7 : vector<8x1xf32>
    %9 = math.rsqrt %8 : vector<8x1xf32>
    %c0_3 = arith.constant 0 : index
    %c0_4 = arith.constant 0 : index
    %10 = vector.load %arg2[%c0_3, %c0_4] : memref<8x1xf32, #tpu.memory_space<vmem>>, vector<8x1xf32>
    tpu.vector_store %arg2[%c0_3, %c0_4], %9 {strides = array<i32>} : memref<8x1xf32, #tpu.memory_space<vmem>>, vector<8x1xf32>,
    return
  }
  func.func @transform_0(%arg0: i32) -> (i32, i32) {
    %c0_i32 = arith.constant 0 : i32
    %c0_i32_0 = arith.constant 0 : i32
    return %arg0, %c0_i32 : i32, i32
  }
  func.func @transform_1(%arg0: i32) -> (i32, i32) {
    %c0_i32 = arith.constant 0 : i32
    %c0_i32_0 = arith.constant 0 : i32
    return %arg0, %c0_i32 : i32, i32
  }
}

</mosaic_0001>

<llo_original>
// kernel: tpu_custom_call.1
$region0: #{tpu_custom_call.1}
  #allocation0 [shape = 'u32[]', space=smem, size = 0x4, offset = 0x4, fixed_abs, tag = 'smem constant byte address 0x4 - core index']
  #allocation1 [shape = 'u32[144,128]{1,0:T(1,128)}', space=vmem, size = 0x12000, scoped, tag = 'internal scratch']
  %s0 = inlined_call_operand.hbm [shape: bf16[8,32], index: 0, kind: input, shape index: {}]
  %s1 = inlined_call_operand.vmem [shape: f32[8,1], index: 1, kind: output, shape index: {}]
  %s2 = sld [smem:[#allocation0]]
  $region18: #{tpu_custom_call.1} parent=0
    _
  %s4 = ssub.s32 1, %s2
  %s5 = scalar_select 0, %s4, %s2
  $region1: #{tpu_custom_call.1} parent=0
    #allocation2 [shape = 'u8[2048]{0}', space=vmem, size = 0x800, scoped, tag = 'input window, operand 0, single buffered']
    #allocation3 [shape = 's32[1]{0}', space=sflag, size = 0x4, scoped, tag = 'scoped memory for tpu_custom_call.1']
    %6 = vsyncpa [#allocation3], 0
    // Predicated region
    $region2: #{tpu_custom_call.1} parent=1 // pred_check
      _
    $region3: #{tpu_custom_call.1} parent=1 // pred_check_branch
      %8 = sbr.rel (0) target = $region5
    $region4: #{tpu_custom_call.1} parent=1 // pred_region
      %s10 = ssub.s32 64, 64
      %11 = vsyncadd [#allocation3], %s10
      %s13 = sshll.u32 [#allocation2], 4
      %s14 = int_to_ptr.vmem [resolvable:$true] %s13
      %16 = dma.hbm_to_vmem [thread:$0]  %s0, 64, %s14, [#allocation3]
    $region5: #{tpu_custom_call.1} parent=1 // pred_fallthru
      _
    // Predicated region
    $region6: #{tpu_custom_call.1} parent=1 // pred_check
      _
    $region7: #{tpu_custom_call.1} parent=1 // pred_check_branch
      %18 = sbr.rel (0) target = $region9
    $region8: #{tpu_custom_call.1} parent=1 // pred_region
      %19 = dma.done [#allocation3], 64
    $region9: #{tpu_custom_call.1} parent=1 // pred_fallthru
      _
    %v20 = vld [vmem:[#allocation2] sm:$0xf]
    %v21 = vunpack.c.l.bf16 %v20
    %v22 = vmul.f32 %v21, %v21
    %vm23 = vcmask 261120
    %v24 = vsel %vm23, %v22, 0.0
    %25 = vadd.xlane.f32.xlu0 %v24
    %v26 = vpop.xlane.xlu0 %25
    %v27 = vrcp.pop 32.0
    %v28 = vmul.f32 %v26, %v27
    %v29 = vadd.f32 %v28, 1e-06
    %v30 = vrsqrt.pop %v29
    %vm31 = vcmask 7168
    %32 = vst.msk [vmem:[%s1] sm:$0xff] %vm31, %v30
    // Predicated region
    $region10: #{tpu_custom_call.1} parent=1 // pred_check
      _
    $region11: #{tpu_custom_call.1} parent=1 // pred_check_branch
      %34 = sbr.rel (0) target = $region13
    $region12: #{tpu_custom_call.1} parent=1 // pred_region
      _
    $region13: #{tpu_custom_call.1} parent=1 // pred_fallthru
      _
    // Predicated region
    $region14: #{tpu_custom_call.1} parent=1 // pred_check
      _
    $region15: #{tpu_custom_call.1} parent=1 // pred_check_branch
      %36 = sbr.rel (0) target = $region17
    $region16: #{tpu_custom_call.1} parent=1 // pred_region
      _
    $region17: #{tpu_custom_call.1} parent=1 // pred_fallthru
      _
    %37 = vsyncpa [#allocation3], 1

</llo_original>
